<compile_context>
chip_gen: v5e
topology: v5e:2x2
jax: 0.10.0
libtpu: 0.0.40
codegen_flags: <defaults>
</compile_context>

<pallas_src>
import jax
import jax.numpy as jnp
from jax.experimental import pallas as pl
from jax.experimental.pallas import tpu as pltpu

_LANE = 128  # vreg lane width


def _msd_kernel(coeff_ref, x_ref, o_ref):
    """One (2, TBL) batch tile.

    coeff_ref : SMEM (2,) f32  = [-k/m, -b/m]
    x_ref     : VMEM (2, TBL)  row 0 = position, row 1 = velocity
    o_ref     : VMEM (2, TBL)  dx
    """
    neg_k_over_m = coeff_ref[0]
    neg_b_over_m = coeff_ref[1]

    pos = x_ref[0:1, :].astype(jnp.float32)   # (1, TBL)
    vel = x_ref[1:2, :].astype(jnp.float32)   # (1, TBL)

    o_ref[0:1, :] = vel.astype(o_ref.dtype)
    o_ref[1:2, :] = (neg_k_over_m * pos + neg_b_over_m * vel).astype(o_ref.dtype)


def _choose_block_lanes(n_batch, max_block_lanes):
    """Pick the per-block lane count (multiple of 128).

    Aims for >= ~8 grid steps so the 'parallel' grid axis can shard across the
    two TensorCores on v7x, while capping per-buffer VMEM (block is padded to
    8 sublanes in VMEM -> 32 * TBL bytes for f32).
    """
    target = -(-n_batch // 8)                              # cdiv(n_batch, 8)
    tbl = ((target + _LANE - 1) // _LANE) * _LANE          # round up to 128
    return max(_LANE, min(max_block_lanes, tbl))


def mass_spring_damper_forward(
    t,
    x,
    *,
    m=1.0,
    k=1.0,
    b=0.5,
    max_block_lanes=131072,   # <= 4 MiB padded f32 per buffer (16 MiB dbl-buffered)
    min_pallas_batch=512,     # below this, plain XLA fusion beats kernel launch
):
    """dx = A @ x with A = [[0, 1], [-k/m, -b/m]].  t is unused (API parity).

    x: (2, N) — [position; velocity] columns.  Output has the same shape/dtype.
    """
    del t  # unused by the dynamics, kept for signature parity with the module
    n_state, n_batch = x.shape
    assert n_state == 2, "state dimension must be 2 (position, velocity)"
    out_dtype = x.dtype

    neg_k_over_m = -k / m
    neg_b_over_m = -b / m

    # Tiny-N fast path: launch overhead dwarfs the 3 flops/column of work.
    if n_batch < min_pallas_batch:
        xf = x.astype(jnp.float32)
        dx = jnp.stack(
            [xf[1], neg_k_over_m * xf[0] + neg_b_over_m * xf[1]], axis=0
        )
        return dx.astype(out_dtype)

    # Runtime coefficients live in SMEM -> no recompile when (m, k, b) change.
    coeffs = jnp.asarray([neg_k_over_m, neg_b_over_m], dtype=jnp.float32)

    tbl = _choose_block_lanes(n_batch, max_block_lanes)
    grid = (pl.cdiv(n_batch, tbl),)  # partial final block: Pallas masks writeback

    return pl.pallas_call(
        _msd_kernel,
        out_shape=jax.ShapeDtypeStruct((2, n_batch), out_dtype),
        grid=grid,
        in_specs=[
            pl.BlockSpec(memory_space=pltpu.MemorySpace.SMEM),   # coeffs
            pl.BlockSpec((2, tbl), lambda i: (0, i)),            # x tile
        ],
        out_specs=pl.BlockSpec((2, tbl), lambda i: (0, i)),
        compiler_params=pltpu.CompilerParams(
            dimension_semantics=("parallel",),   # embarrassingly parallel batch
            vmem_limit_bytes=32 << 20,           # headroom for large tiles on v5e
        ),
    )(coeffs, x)


if __name__ == "__main__":
    key = jax.random.PRNGKey(0)
    m, k, b = 1.0, 1.0, 0.5
    t = jnp.float32(0.0)  # unused by the dynamics, kept for API parity

    A = jnp.array([[0.0, 1.0], [-k / m, -b / m]], dtype=jnp.float32)

    k1, k2, k3 = jax.random.split(key, 3)
    cases = {
        # small batch -> plain-jnp fast path (no kernel launch)
        "tiny_fastpath": jax.random.normal(k1, (2, 8), dtype=jnp.float32),
        # lane-aligned batch -> Pallas kernel, full blocks only
        "pallas_aligned": jax.random.normal(k2, (2, 1024), dtype=jnp.float32),
        # ragged batch -> Pallas kernel with a masked partial final block
        "pallas_ragged": jax.random.normal(k3, (2, 1000), dtype=jnp.float32),
    }

    for name, x in cases.items():
        dx = jax.block_until_ready(
            mass_spring_damper_forward(t, x, m=m, k=k, b=b)
        )
        ref = A @ x
        assert dx.shape == x.shape, name
        assert dx.dtype == x.dtype, name
        assert jnp.allclose(dx, ref, atol=1e-5, rtol=1e-5), name

    print("KERNEL_OK")
</pallas_src>

<mosaic_0001>
module attributes {stable_mosaic.version = 11 : i64} {
  func.func @_msd_kernel(%arg0: i32, %arg1: memref<2xf32, #tpu.memory_space<smem>>, %arg2: memref<2x128xf32, #tpu.memory_space<vmem>>, %arg3: memref<2x128xf32, #tpu.memory_space<vmem>>) attributes {dimension_semantics = [#tpu.dimension_semantics<parallel>], iteration_bounds = array<i64: 8>, scalar_prefetch = 0 : i64, scratch_operands = 0 : i64, tpu.core_type = #tpu.core_type<tc>, window_params = [{transform_indices = @transform_0, window_bounds = array<i64: 2>}, {transform_indices = @transform_1, window_bounds = array<i64: 2, 128>}, {transform_indices = @transform_2, window_bounds = array<i64: 2, 128>}]} {
    %c0 = arith.constant 0 : index
    %0 = memref.load %arg1[%c0] : memref<2xf32, #tpu.memory_space<smem>>
    %c1 = arith.constant 1 : index
    %1 = memref.load %arg1[%c1] : memref<2xf32, #tpu.memory_space<smem>>
    %c0_0 = arith.constant 0 : index
    %c0_1 = arith.constant 0 : index
    %2 = vector.load %arg2[%c0_0, %c0_1] : memref<2x128xf32, #tpu.memory_space<vmem>>, vector<1x128xf32>
    %c1_2 = arith.constant 1 : index
    %c0_3 = arith.constant 0 : index
    %3 = vector.load %arg2[%c1_2, %c0_3] : memref<2x128xf32, #tpu.memory_space<vmem>>, vector<1x128xf32>
    %c0_4 = arith.constant 0 : index
    %c0_5 = arith.constant 0 : index
    %4 = vector.load %arg3[%c0_4, %c0_5] : memref<2x128xf32, #tpu.memory_space<vmem>>, vector<1x128xf32>
    tpu.vector_store %arg3[%c0_4, %c0_5], %3 {strides = array<i32>} : memref<2x128xf32, #tpu.memory_space<vmem>>, vector<1x128xf32>,
    %5 = vector.broadcast %0 : f32 to vector<1x128xf32>
    %6 = arith.mulf %5, %2 : vector<1x128xf32>
    %7 = vector.broadcast %1 : f32 to vector<1x128xf32>
    %8 = arith.mulf %7, %3 : vector<1x128xf32>
    %9 = arith.addf %6, %8 : vector<1x128xf32>
    %c1_6 = arith.constant 1 : index
    %c0_7 = arith.constant 0 : index
    %10 = vector.load %arg3[%c1_6, %c0_7] : memref<2x128xf32, #tpu.memory_space<vmem>>, vector<1x128xf32>
    tpu.vector_store %arg3[%c1_6, %c0_7], %9 {strides = array<i32>} : memref<2x128xf32, #tpu.memory_space<vmem>>, vector<1x128xf32>,
    return
  }
  func.func @transform_0(%arg0: i32) -> i32 {
    %c0_i32 = arith.constant 0 : i32
    %c0_i32_0 = arith.constant 0 : i32
    return %c0_i32 : i32
  }
  func.func @transform_1(%arg0: i32) -> (i32, i32) {
    %c0_i32 = arith.constant 0 : i32
    %c0_i32_0 = arith.constant 0 : i32
    return %c0_i32, %arg0 : i32, i32
  }
  func.func @transform_2(%arg0: i32) -> (i32, i32) {
    %c0_i32 = arith.constant 0 : i32
    %c0_i32_0 = arith.constant 0 : i32
    return %c0_i32, %arg0 : i32, i32
  }
}

</mosaic_0001>

<llo_original>
// kernel: tpu_custom_call.1
$region0: #{tpu_custom_call.1}
  #allocation0 [shape = 'u32[]', space=smem, size = 0x4, offset = 0x4, fixed_abs, tag = 'smem constant byte address 0x4 - core index']
  #allocation1 [shape = 'u32[72,128]{1,0:T(1,128)}', space=vmem, size = 0x9000, scoped, tag = 'internal scratch']
  %s0 = inlined_call_operand.hbm [shape: f32[2], index: 0, kind: input, shape index: {}]
  %s1 = inlined_call_operand.hbm [shape: f32[2,1024], index: 1, kind: input, shape index: {}]
  %s2 = inlined_call_operand.hbm [shape: f32[2,1024], index: 2, kind: output, shape index: {}]
  %s3 = sld [smem:[#allocation0]]
  $region49: #{tpu_custom_call.1} parent=0
    _
  %s5 = ssub.s32 1, %s3
  %s6 = scalar_select 0, %s5, %s3
  $region1: #{tpu_custom_call.1} parent=0
    #allocation2 [shape = 'u8[512]{0}', space=smem, size = 0x200, scoped, tag = 'input window, operand 0, single buffered']
    #allocation3 [shape = 's32[2]{0}', space=sflag, size = 0x8, scoped, tag = 'scoped memory for tpu_custom_call.1']
    #allocation4 [shape = 's32[2]{0}', space=sflag, size = 0x8, scoped, tag = 'scoped memory for tpu_custom_call.1']
    #allocation5 [shape = 's32[2]{0}', space=sflag, size = 0x8, scoped, tag = 'scoped memory for tpu_custom_call.1']
    #allocation6 [shape = 'u8[2048]{0}', space=vmem, size = 0x800, scoped, tag = 'input window, operand 1']
    #allocation7 [shape = 'u8[2048]{0}', space=vmem, size = 0x800, scoped, tag = 'output window, operand 0']
    %7 = vsyncpa [#allocation5], 0
    %8 = vsyncpa [#allocation3], 0
    %s9 = scalar_lea.sflag [#allocation3], 1
    %10 = vsyncpa %s9, 0
    %11 = vsyncpa [#allocation4], 0
    %s12 = scalar_lea.sflag [#allocation4], 1
    %13 = vsyncpa %s12, 0
    loop: start=0, step=1, limit=10
    $region2: #{tpu_custom_call.1} parent=1 // loop_pre_header
      _
    $region3: #{tpu_custom_call.1} parent=1 // loop_header
      %s15 = sphi 0, %s19
      %p16 = scmp.ge.s32.totalorder %s15, 10
      %s23 = sphi 0, %s23
      %s25 = sphi 0, %s23
      %s26 = sphi 0, %s25
      %s40 = sphi 0, %s26
      %s46 = sphi 0, %s48
      %s49 = sphi 0, %s46
      %s50 = sphi 0, %s49
      %s66 = sphi 0, %s50
      %s72 = sphi 0, %s74
      %s75 = sphi 0, %s72
      %s76 = sphi 0, %s75
      %s92 = sphi 0, %s76
    $region4: #{tpu_custom_call.1} parent=1 // loop_header_branch
      %18 = sbr.rel (%p16) target = $region8
    $region5: #{tpu_custom_call.1} parent=1 // loop_body
      %s20 = ssub.s32 %s15, 1
      %s21 = ssub.s32 %s15, 2
      %s22 = sadd.s32 %s15, 1
      %s24 = sadd.s32 %s23, 1
      %p27 = scmp.eq.s32.totalorder %s15, 7
      %p28 = scmp.ne.s32.totalorder %s23, %s25
      %p29 = scmp.eq.s32.totalorder %s15, 0
      %p30 = por %p28, %p29
      %p31 = scmp.ne.s32.totalorder %s23, %s25
      %p32 = scmp.eq.s32.totalorder %s20, 7
      %p33 = por %p31, %p32
      %p34 = scmp.ne.s32.totalorder %s25, %s26
      %p35 = scmp.eq.s32.totalorder %s20, 0
      %p36 = por %p34, %p35
      %p37 = scmp.ne.s32.totalorder %s25, %s26
      %p38 = scmp.eq.s32.totalorder %s21, 7
      %p39 = por %p37, %p38
      %p41 = scmp.ne.s32.totalorder %s26, %s40
      %p42 = scmp.eq.s32.totalorder %s21, 0
      %p43 = por %p41, %p42
      %s44 = ssub.s32 %s15, %s22
      %p45 = scmp.eq.s32.totalorder %s44, 0
      %s47 = sadd.s32 %s46, 1
      %s48 = scalar_select %p45, %s46, %s47
      %p51 = pneg %p45
      %p52 = scmp.eq.s32.totalorder %s15, 7
      %p53 = por %p51, %p52
      %p54 = scmp.ne.s32.totalorder %s46, %s49
      %p55 = scmp.eq.s32.totalorder %s15, 0
      %p56 = por %p54, %p55
      %p57 = scmp.ne.s32.totalorder %s46, %s49
      %p58 = scmp.eq.s32.totalorder %s20, 7
      %p59 = por %p57, %p58
      %p60 = scmp.ne.s32.totalorder %s49, %s50
      %p61 = scmp.eq.s32.totalorder %s20, 0
      %p62 = por %p60, %p61
      %p63 = scmp.ne.s32.totalorder %s49, %s50
      %p64 = scmp.eq.s32.totalorder %s21, 7
      %p65 = por %p63, %p64
      %p67 = scmp.ne.s32.totalorder %s50, %s66
      %p68 = scmp.eq.s32.totalorder %s21, 0
      %p69 = por %p67, %p68
      %s70 = ssub.s32 %s15, %s22
      %p71 = scmp.eq.s32.totalorder %s70, 0
      %s73 = sadd.s32 %s72, 1
      %s74 = scalar_select %p71, %s72, %s73
      %p77 = pneg %p71
      %p78 = scmp.eq.s32.totalorder %s15, 7
      %p79 = por %p77, %p78
      %p80 = scmp.ne.s32.totalorder %s72, %s75
      %p81 = scmp.eq.s32.totalorder %s15, 0
      %p82 = por %p80, %p81
      %p83 = scmp.ne.s32.totalorder %s72, %s75
      %p84 = scmp.eq.s32.totalorder %s20, 7
      %p85 = por %p83, %p84
      %p86 = scmp.ne.s32.totalorder %s75, %s76
      %p87 = scmp.eq.s32.totalorder %s20, 0
      %p88 = por %p86, %p87
      %p89 = scmp.ne.s32.totalorder %s75, %s76
      %p90 = scmp.eq.s32.totalorder %s21, 7
      %p91 = por %p89, %p90
      %p93 = scmp.ne.s32.totalorder %s76, %s92
      %p94 = scmp.eq.s32.totalorder %s21, 0
      %p95 = por %p93, %p94
      %p96 = scmp.le.s32.totalorder 1, %s15
      %p97 = scmp.lt.s32.totalorder %s15, 9
      %p98 = pnand %p96, %p97
      %p99 = pneg %p98
      // Predicated region
      $region9: #{tpu_custom_call.1} parent=5 // pred_check
        _
      $region10: #{tpu_custom_call.1} parent=5 // pred_check_branch
        %101 = sbr.rel (%p98) target = $region12
      $region11: #{tpu_custom_call.1} parent=5 // pred_region
        %s102 = ssub.s32 %s15, 1
        // Predicated region
        $region13: #{tpu_custom_call.1} parent=11 // pred_check
          %p103 = pneg %p36
        $region14: #{tpu_custom_call.1} parent=11 // pred_check_branch
          %105 = sbr.rel (%p103) target = $region16
        $region15: #{tpu_custom_call.1} parent=11 // pred_region
          %107 = vsyncadd [#allocation5], 0
          %s109 = sshll.u32 %s0, 4
          %s110 = int_to_ptr.hbm [resolvable:$true] %s109
          %112 = dma.hbm_to_smem %s110, 16, [#allocation2], [#allocation5]
        $region16: #{tpu_custom_call.1} parent=11 // pred_fallthru
          _
      $region12: #{tpu_custom_call.1} parent=5 // pred_fallthru
        _
      %p113 = scmp.lt.s32.totalorder %s15, 8
      // Predicated region
      $region17: #{tpu_custom_call.1} parent=5 // pred_check
        %p114 = pneg %p113
      $region18: #{tpu_custom_call.1} parent=5 // pred_check_branch
        %116 = sbr.rel (%p114) target = $region20
      $region19: #{tpu_custom_call.1} parent=5 // pred_region
        // Predicated region
        $region21: #{tpu_custom_call.1} parent=19 // pred_check
          %p117 = pneg %p56
        $region22: #{tpu_custom_call.1} parent=19 // pred_check_branch
          %119 = sbr.rel (%p117) target = $region24
        $region23: #{tpu_custom_call.1} parent=19 // pred_region
          %s120 = sand.u32 %s46, 1
          %s121 = scalar_lea.sflag [#allocation3], %s120
          %s122 = sand.u32 %s46, 1
          %s123 = smul.addr %s122, 2
          %s124 = scalar_lea.vmem [#allocation6], %s123
          %126 = vsyncadd %s121, 0
          %s127 = smul.addr %s15, 2
          %s128 = scalar_lea.hbm %s1, %s127
          %s130 = sshll.u32 %s128, 4
          %s131 = int_to_ptr.hbm [resolvable:$true] %s130
          %s132 = sshll.u32 %s124, 4
          %s133 = int_to_ptr.vmem [resolvable:$true] %s132
          %135 = dma.hbm_to_vmem [thread:$0]  %s131, 32, %s133, %s121
        $region24: #{tpu_custom_call.1} parent=19 // pred_fallthru
          _
      $region20: #{tpu_custom_call.1} parent=5 // pred_fallthru
        _
      %p136 = scmp.le.s32.totalorder 1, %s15
      %p137 = scmp.lt.s32.totalorder %s15, 9
      %p138 = pnand %p136, %p137
      %p139 = pneg %p138
      // Predicated region
      $region25: #{tpu_custom_call.1} parent=5 // pred_check
        _
      $region26: #{tpu_custom_call.1} parent=5 // pred_check_branch
        %141 = sbr.rel (%p138) target = $region28
      $region27: #{tpu_custom_call.1} parent=5 // pred_region
        %s142 = ssub.s32 %s15, 1
        // Predicated region
        $region29: #{tpu_custom_call.1} parent=27 // pred_check
          %p143 = pneg %p36
        $region30: #{tpu_custom_call.1} parent=27 // pred_check_branch
          %145 = sbr.rel (%p143) target = $region32
        $region31: #{tpu_custom_call.1} parent=27 // pred_region
          %147 = dma.done [#allocation5], 16
        $region32: #{tpu_custom_call.1} parent=27 // pred_fallthru
          _
        %s148 = sand.u32 %s49, 1
        %s149 = scalar_lea.sflag [#allocation3], %s148
        %s150 = sand.u32 %s49, 1
        %s151 = smul.addr %s150, 2
        %s152 = scalar_lea.vmem [#allocation6], %s151
        // Predicated region
        $region33: #{tpu_custom_call.1} parent=27 // pred_check
          %p153 = pneg %p62
        $region34: #{tpu_custom_call.1} parent=27 // pred_check_branch
          %155 = sbr.rel (%p153) target = $region36
        $region35: #{tpu_custom_call.1} parent=27 // pred_region
          %157 = dma.done %s149, 32
        $region36: #{tpu_custom_call.1} parent=27 // pred_fallthru
          _
        %158 = sfence
        %p159 = pneg %p36
        %p160 = pneg %p33
        %s161 = sand.u32 %s49, 1
        %s162 = scalar_lea.sflag [#allocation3], %s161
        %s163 = sand.u32 %s49, 1
        %s164 = smul.addr %s163, 2
        %s165 = scalar_lea.vmem [#allocation6], %s164
        %p166 = pneg %p62
        %p167 = pneg %p59
        %p168 = pneg %p88
        %p169 = pneg %p85
        %s170 = sand.u32 %s75, 1
        %s171 = scalar_lea.sflag [#allocation4], %s170
        %s172 = sand.u32 %s75, 1
        %s173 = smul.addr %s172, 2
        %s174 = scalar_lea.vmem [#allocation7], %s173
        %s175 = sld [smem:[#allocation2]]
        %s176 = sld [smem:[#allocation2 + $0x1]]
        %v177 = vld [vmem:[%s152] sm:$0x1]
        %v178 = vld [vmem:[%s152 + $0x1] sm:$0x1]
        %179 = vst [vmem:[%s174] sm:$0x1] %v178
        %v180 = vstv %s175
        %v181 = vmul.f32 %v180, %v177
        %v182 = vstv %s176
        %v183 = vmul.f32 %v182, %v178
        %v184 = vadd.f32 %v181, %v183
        %185 = vst [vmem:[%s174 + $0x1] sm:$0x1] %v184
        %s186 = sand.u32 %s75, 1
        %s187 = scalar_lea.sflag [#allocation4], %s186
        %s188 = sand.u32 %s75, 1
        %s189 = smul.addr %s188, 2
        %s190 = scalar_lea.vmem [#allocation7], %s189
        // Predicated region
        $region37: #{tpu_custom_call.1} parent=27 // pred_check
          %p191 = pneg %p85
        $region38: #{tpu_custom_call.1} parent=27 // pred_check_branch
          %193 = sbr.rel (%p191) target = $region40
        $region39: #{tpu_custom_call.1} parent=27 // pred_region
          %195 = vsyncadd %s187, 0
          %s196 = smul.addr %s20, 2
          %s197 = scalar_lea.hbm %s2, %s196
          %s199 = sshll.u32 %s190, 4
          %s200 = int_to_ptr.vmem [resolvable:$true] %s199
          %s201 = sshll.u32 %s197, 4
          %s202 = int_to_ptr.hbm [resolvable:$true] %s201
          %204 = dma.vmem_to_hbm [thread:$0]  %s200, 32, %s202, %s187
        $region40: #{tpu_custom_call.1} parent=27 // pred_fallthru
          _
      $region28: #{tpu_custom_call.1} parent=5 // pred_fallthru
        _
      %p205 = scmp.le.s32.totalorder 2, %s15
      // Predicated region
      $region41: #{tpu_custom_call.1} parent=5 // pred_check
        %p206 = pneg %p205
      $region42: #{tpu_custom_call.1} parent=5 // pred_check_branch
        %208 = sbr.rel (%p206) target = $region44
      $region43: #{tpu_custom_call.1} parent=5 // pred_region
        %s209 = ssub.s32 %s15, 2
        // Predicated region
        $region45: #{tpu_custom_call.1} parent=43 // pred_check
          %p210 = pneg %p91
        $region46: #{tpu_custom_call.1} parent=43 // pred_check_branch
          %212 = sbr.rel (%p210) target = $region48
        $region47: #{tpu_custom_call.1} parent=43 // pred_region
          %s213 = sand.u32 %s76, 1
          %s214 = scalar_lea.sflag [#allocation4], %s213
          %s215 = sand.u32 %s76, 1
          %s216 = smul.addr %s215, 2
          %s217 = scalar_lea.vmem [#allocation7], %s216
          %219 = dma.done %s214, 32
        $region48: #{tpu_custom_call.1} parent=43 // pred_fallthru
          _
      $region44: #{tpu_custom_call.1} parent=5 // pred_fallthru
        _
    $region6: #{tpu_custom_call.1} parent=1 // loop_footer
      %s19 = sadd.s32 1, %s15
    $region7: #{tpu_custom_call.1} parent=1 // loop_footer_branch
      %14 = sbr.rel target = $region3
    $region8: #{tpu_custom_call.1} parent=1 // loop_exit
      _
    %220 = vsyncpa [#allocation3], 1
    %s221 = scalar_lea.sflag [#allocation3], 1
    %222 = vsyncpa %s221, 1
    %223 = vsyncpa [#allocation4], 1
    %s224 = scalar_lea.sflag [#allocation4], 1
    %225 = vsyncpa %s224, 1
    %226 = vsyncpa [#allocation5], 1
    %s227 = scalar_lea.sflag [#allocation5], 1
    %228 = vsyncpa %s227, 1

</llo_original>
